<compile_context>
chip_gen: v5e
topology: v5e:2x2
jax: 0.10.0
libtpu: 0.0.40
codegen_flags: <defaults>
</compile_context>

<pallas_src>
import functools

import jax
import jax.numpy as jnp
from jax import lax
from jax.experimental import pallas as pl
from jax.experimental.pallas import tpu as pltpu


def _round_up(x, m):
    return ((x + m - 1) // m) * m


# ---------------------------------------------------------------------------
# Kernels
# ---------------------------------------------------------------------------
def dqn_kernel(x_ref, w1_ref, b1_ref, w2_ref, b2_ref, o_ref):
    # fc1: MXU matmul with f32 accumulation.
    h = jnp.dot(x_ref[...], w1_ref[...], preferred_element_type=jnp.float32)
    # bias + ReLU in f32 on the VPU (safe on v5e, which has no bf16 VPU path).
    h = jnp.maximum(h + b1_ref[...], 0.0)
    # Cast hidden to the weight dtype (bf16 MXU fast path when packed bf16).
    y = jnp.dot(h.astype(w2_ref.dtype), w2_ref[...],
                preferred_element_type=jnp.float32)
    o_ref[...] = (y + b2_ref[...]).astype(o_ref.dtype)


def dqn_argmax_kernel(x_ref, w1_ref, b1_ref, w2_ref, b2_ref, a_ref, *,
                      out_actions):
    # Same forward as dqn_kernel, then a fused masked argmax over actions.
    h = jnp.dot(x_ref[...], w1_ref[...], preferred_element_type=jnp.float32)
    h = jnp.maximum(h + b1_ref[...], 0.0)
    q = jnp.dot(h.astype(w2_ref.dtype), w2_ref[...],
                preferred_element_type=jnp.float32) + b2_ref[...]
    col = lax.broadcasted_iota(jnp.int32, q.shape, 1)
    valid = col < out_actions                      # mask padded action lanes
    q = jnp.where(valid, q, -1e30)
    q_max = jnp.max(q, axis=-1, keepdims=True)
    # first index attaining the max (== jnp.argmax tie-break); f32 min-reduce.
    idx = jnp.where(q == q_max, col.astype(jnp.float32),
                    jnp.float32(q.shape[-1]))
    a_ref[...] = jnp.min(idx, axis=-1, keepdims=True).astype(jnp.int32)


# ---------------------------------------------------------------------------
# Parameter packing: lane-pad hidden/action dims to 128; weights in
# compute_dtype (f32 or bf16), biases always f32.  Padded entries are zero so
# they never leak into real outputs.
# ---------------------------------------------------------------------------
def pack_dqn_params(w1, b1, w2, b2, compute_dtype=jnp.float32):
    in_states, h1 = w1.shape
    out_actions = w2.shape[1]
    h_pad = _round_up(h1, 128)
    out_pad = _round_up(out_actions, 128)

    w1_p = jnp.zeros((in_states, h_pad), compute_dtype)
    w1_p = w1_p.at[:, :h1].set(w1.astype(compute_dtype))
    b1_p = jnp.zeros((1, h_pad), jnp.float32)
    b1_p = b1_p.at[0, :h1].set(b1.astype(jnp.float32))

    w2_p = jnp.zeros((h_pad, out_pad), compute_dtype)
    w2_p = w2_p.at[:h1, :out_actions].set(w2.astype(compute_dtype))
    b2_p = jnp.zeros((1, out_pad), jnp.float32)
    b2_p = b2_p.at[0, :out_actions].set(b2.astype(jnp.float32))
    return w1_p, b1_p, w2_p, b2_p


def _cost_estimate(B_pad, in_states, h_pad, out_pad, w_itemsize):
    flops = 2 * B_pad * (in_states * h_pad + h_pad * out_pad)
    bytes_accessed = (B_pad * in_states * w_itemsize            # x
                      + in_states * h_pad * w_itemsize          # W1
                      + h_pad * 4 + out_pad * 4                 # biases (f32)
                      + h_pad * out_pad * w_itemsize            # W2
                      + B_pad * out_pad * 4)                    # output (f32)
    return pl.CostEstimate(flops=flops, transcendentals=0,
                           bytes_accessed=bytes_accessed)


def _pad_batch(x, B_pad, dtype):
    B = x.shape[0]
    x = x.astype(dtype)
    if B_pad == B:
        return x
    return jnp.zeros((B_pad, x.shape[1]), dtype).at[:B].set(x)


# ---------------------------------------------------------------------------
# Forward wrapper: returns Q-values (B, out_actions) in f32.
# ---------------------------------------------------------------------------
def dqn_forward(x, w1_p, b1_p, w2_p, b2_p, out_actions, *, batch_tile=1024):
    B, in_states = x.shape
    h_pad = w1_p.shape[1]
    out_pad = w2_p.shape[1]
    compute_dtype = w1_p.dtype

    use_grid = B > batch_tile
    if use_grid:
        n_tiles = pl.cdiv(B, batch_tile)          # >= 2 since B > batch_tile
        B_pad = n_tiles * batch_tile
    else:
        B_pad = _round_up(max(B, 8), 8)

    x_p = _pad_batch(x, B_pad, compute_dtype)
    out_shape = jax.ShapeDtypeStruct((B_pad, out_pad), jnp.float32)
    ce = _cost_estimate(B_pad, in_states, h_pad, out_pad,
                        jnp.dtype(compute_dtype).itemsize)

    if not use_grid:
        # Small-batch / action-value path: no grid, whole working set in VMEM.
        y = pl.pallas_call(
            dqn_kernel,
            out_shape=out_shape,
            in_specs=[pl.BlockSpec(memory_space=pltpu.MemorySpace.VMEM)] * 5,
            out_specs=pl.BlockSpec(memory_space=pltpu.MemorySpace.VMEM),
            cost_estimate=ce,
        )(x_p, w1_p, b1_p, w2_p, b2_p)
    else:
        # Replay-buffer path: tile the batch only.  Weight/bias blocks have a
        # constant block index so they stay VMEM-resident across grid steps;
        # the batch axis is "parallel" so v7x shards it over its 2 TCs
        # (grid length is always >= 2 here).
        TB = batch_tile
        y = pl.pallas_call(
            dqn_kernel,
            out_shape=out_shape,
            grid=(B_pad // TB,),
            in_specs=[
                pl.BlockSpec((TB, in_states), lambda i: (i, 0)),
                pl.BlockSpec((in_states, h_pad), lambda i: (0, 0)),
                pl.BlockSpec((1, h_pad), lambda i: (0, 0)),
                pl.BlockSpec((h_pad, out_pad), lambda i: (0, 0)),
                pl.BlockSpec((1, out_pad), lambda i: (0, 0)),
            ],
            out_specs=pl.BlockSpec((TB, out_pad), lambda i: (i, 0)),
            compiler_params=pltpu.CompilerParams(
                dimension_semantics=("parallel",)),
            cost_estimate=ce,
        )(x_p, w1_p, b1_p, w2_p, b2_p)

    return y[:B, :out_actions]


# ---------------------------------------------------------------------------
# Fused action selection: argmax over Q inside the kernel, (B,) int32 out.
# Removes the 128-lane output writeback + wrapper slice on the latency-bound
# rollout path.  Padded rows are sliced off; padded action lanes are masked.
# ---------------------------------------------------------------------------
def dqn_select_action(x, w1_p, b1_p, w2_p, b2_p, out_actions):
    B, in_states = x.shape
    h_pad = w1_p.shape[1]
    out_pad = w2_p.shape[1]
    compute_dtype = w1_p.dtype
    B_pad = _round_up(max(B, 8), 8)

    x_p = _pad_batch(x, B_pad, compute_dtype)
    ce = _cost_estimate(B_pad, in_states, h_pad, out_pad,
                        jnp.dtype(compute_dtype).itemsize)
    kernel = functools.partial(dqn_argmax_kernel, out_actions=out_actions)

    a = pl.pallas_call(
        kernel,
        out_shape=jax.ShapeDtypeStruct((B_pad, 1), jnp.int32),
        in_specs=[pl.BlockSpec(memory_space=pltpu.MemorySpace.VMEM)] * 5,
        out_specs=pl.BlockSpec(memory_space=pltpu.MemorySpace.VMEM),
        cost_estimate=ce,
    )(x_p, w1_p, b1_p, w2_p, b2_p)
    return a[:B, 0]


# ---------------------------------------------------------------------------
# Init matching torch.nn.Linear default U(-1/sqrt(fan_in), 1/sqrt(fan_in)),
# weights stored transposed as [in, out].
# ---------------------------------------------------------------------------
def init_dqn_params(key, in_states, h1_nodes, out_actions, dtype=jnp.float32):
    k1, k2, k3, k4 = jax.random.split(key, 4)
    bound1 = 1.0 / (in_states ** 0.5)
    bound2 = 1.0 / (h1_nodes ** 0.5)
    w1 = jax.random.uniform(k1, (in_states, h1_nodes), dtype, -bound1, bound1)
    b1 = jax.random.uniform(k2, (h1_nodes,), dtype, -bound1, bound1)
    w2 = jax.random.uniform(k3, (h1_nodes, out_actions), dtype, -bound2, bound2)
    b2 = jax.random.uniform(k4, (out_actions,), dtype, -bound2, bound2)
    return w1, b1, w2, b2


def dqn_reference(x, w1, b1, w2, b2):
    h = jnp.maximum(x @ w1 + b1, 0.0)
    return h @ w2 + b2


if __name__ == "__main__":
    # FrozenLake-style DQN shapes.
    batch, in_states, h1_nodes, out_actions = 2, 16, 32, 4

    key = jax.random.PRNGKey(0)
    kx, kp, kb = jax.random.split(key, 3)
    x = jax.random.normal(kx, (batch, in_states), dtype=jnp.float32)
    w1, b1, w2, b2 = init_dqn_params(kp, in_states, h1_nodes, out_actions)

    # Pack once; reuse across calls.
    params_f32 = pack_dqn_params(w1, b1, w2, b2, jnp.float32)
    ref = dqn_reference(x, w1, b1, w2, b2)

    # --- small-batch (no-grid) Q-value path --------------------------------
    out = dqn_forward(x, *params_f32, out_actions)
    out = jax.block_until_ready(out)
    assert out.shape == (batch, out_actions)
    assert jnp.allclose(out, ref, atol=1e-5, rtol=1e-5)

    # --- fused argmax action-selection path --------------------------------
    act = dqn_select_action(x, *params_f32, out_actions)
    act = jax.block_until_ready(act)
    assert act.shape == (batch,)
    assert jnp.array_equal(act, jnp.argmax(ref, axis=-1).astype(jnp.int32))

    # --- large-batch (tiled grid, parallel batch axis), f32 ----------------
    big_b = 2048
    xb = jax.random.normal(kb, (big_b, in_states), dtype=jnp.float32)
    ref_b = dqn_reference(xb, w1, b1, w2, b2)

    out_b = dqn_forward(xb, *params_f32, out_actions, batch_tile=1024)
    out_b = jax.block_until_ready(out_b)
    assert out_b.shape == (big_b, out_actions)
    assert jnp.allclose(out_b, ref_b, atol=1e-4, rtol=1e-4)

    # --- large-batch path with bf16 weights/activations (f32 accumulation) -
    params_bf16 = pack_dqn_params(w1, b1, w2, b2, jnp.bfloat16)
    out_bf = dqn_forward(xb, *params_bf16, out_actions, batch_tile=1024)
    out_bf = jax.block_until_ready(out_bf)
    assert out_bf.shape == (big_b, out_actions)
    assert jnp.allclose(out_bf, ref_b, atol=1e-1, rtol=1e-1)

    print("KERNEL_OK")
</pallas_src>

<mosaic_0001>
module attributes {stable_mosaic.version = 11 : i64} {
  func.func @dqn_kernel(%arg0: memref<8x16xf32, #tpu.memory_space<vmem>>, %arg1: memref<16x128xf32, #tpu.memory_space<vmem>>, %arg2: memref<1x128xf32, #tpu.memory_space<vmem>>, %arg3: memref<128x128xf32, #tpu.memory_space<vmem>>, %arg4: memref<1x128xf32, #tpu.memory_space<vmem>>, %arg5: memref<8x128xf32, #tpu.memory_space<vmem>>) attributes {dimension_semantics = [], scalar_prefetch = 0 : i64, scratch_operands = 0 : i64, tpu.core_type = #tpu.core_type<tc>} {
    %c0 = arith.constant 0 : index
    %c0_0 = arith.constant 0 : index
    %0 = vector.load %arg0[%c0, %c0_0] : memref<8x16xf32, #tpu.memory_space<vmem>>, vector<8x16xf32>
    %c0_1 = arith.constant 0 : index
    %c0_2 = arith.constant 0 : index
    %1 = vector.load %arg1[%c0_1, %c0_2] : memref<16x128xf32, #tpu.memory_space<vmem>>, vector<16x128xf32>
    %cst = arith.constant dense<0.000000e+00> : vector<8x128xf32>
    %2 = tpu.matmul %0, %1, %cst {dimension_numbers = #tpu.dot_dimension_numbers<[1], [0], [0], [1], [0, 0, 1, 1], [], []>} : vector<8x16xf32>, vector<16x128xf32>, vector<8x128xf32> -> vector<8x128xf32>
    %c0_3 = arith.constant 0 : index
    %c0_4 = arith.constant 0 : index
    %3 = vector.load %arg2[%c0_3, %c0_4] : memref<1x128xf32, #tpu.memory_space<vmem>>, vector<1x128xf32>
    %4 = vector.broadcast %3 : vector<1x128xf32> to vector<8x128xf32>
    %5 = arith.addf %2, %4 : vector<8x128xf32>
    %cst_5 = arith.constant 0.000000e+00 : f32
    %6 = vector.broadcast %cst_5 : f32 to vector<8x128xf32>
    %7 = arith.maximumf %5, %6 : vector<8x128xf32>
    %c0_6 = arith.constant 0 : index
    %c0_7 = arith.constant 0 : index
    %8 = vector.load %arg3[%c0_6, %c0_7] : memref<128x128xf32, #tpu.memory_space<vmem>>, vector<128x128xf32>
    %cst_8 = arith.constant dense<0.000000e+00> : vector<8x128xf32>
    %9 = tpu.matmul %7, %8, %cst_8 {dimension_numbers = #tpu.dot_dimension_numbers<[1], [0], [0], [1], [0, 0, 1, 1], [], []>} : vector<8x128xf32>, vector<128x128xf32>, vector<8x128xf32> -> vector<8x128xf32>
    %c0_9 = arith.constant 0 : index
    %c0_10 = arith.constant 0 : index
    %10 = vector.load %arg4[%c0_9, %c0_10] : memref<1x128xf32, #tpu.memory_space<vmem>>, vector<1x128xf32>
    %11 = vector.broadcast %10 : vector<1x128xf32> to vector<8x128xf32>
    %12 = arith.addf %9, %11 : vector<8x128xf32>
    %c0_11 = arith.constant 0 : index
    %c0_12 = arith.constant 0 : index
    %13 = vector.load %arg5[%c0_11, %c0_12] : memref<8x128xf32, #tpu.memory_space<vmem>>, vector<8x128xf32>
    tpu.vector_store %arg5[%c0_11, %c0_12], %12 {strides = array<i32>} : memref<8x128xf32, #tpu.memory_space<vmem>>, vector<8x128xf32>,
    return
  }
}

</mosaic_0001>

<llo_original>
// kernel: tpu_custom_call.1
$region0: #{tpu_custom_call.1}
  #allocation0 [shape = 'u32[]', space=smem, size = 0x4, offset = 0x4, fixed_abs, tag = 'smem constant byte address 0x4 - core index']
  #allocation1 [shape = 'u32[72,128]{1,0:T(1,128)}', space=vmem, size = 0x9000, scoped, tag = 'internal scratch']
  %s0 = inlined_call_operand.hbm [shape: f32[8,16], index: 0, kind: input, shape index: {}]
  %s1 = inlined_call_operand.hbm [shape: f32[16,128], index: 1, kind: input, shape index: {}]
  %s2 = inlined_call_operand.vmem [shape: f32[1,128], index: 2, kind: input, shape index: {}]
  %s3 = inlined_call_operand.hbm [shape: f32[128,128], index: 3, kind: input, shape index: {}]
  %s4 = inlined_call_operand.vmem [shape: f32[1,128], index: 4, kind: input, shape index: {}]
  %s5 = inlined_call_operand.hbm [shape: f32[8,128], index: 5, kind: output, shape index: {}]
  %s6 = sld [smem:[#allocation0]]
  $region42: #{tpu_custom_call.1} parent=0
    _
  %s8 = ssub.s32 1, %s6
  %s9 = scalar_select 0, %s8, %s6
  $region1: #{tpu_custom_call.1} parent=0
    #allocation2 [shape = 'u8[4096]{0}', space=vmem, size = 0x1000, scoped, tag = 'input window, operand 0, single buffered']
    #allocation3 [shape = 's32[1]{0}', space=sflag, size = 0x4, scoped, tag = 'scoped memory for tpu_custom_call.1']
    #allocation4 [shape = 's32[1]{0}', space=sflag, size = 0x4, scoped, tag = 'scoped memory for tpu_custom_call.1']
    #allocation5 [shape = 'u8[8192]{0}', space=vmem, size = 0x2000, scoped, tag = 'input window, operand 1, single buffered']
    #allocation6 [shape = 's32[1]{0}', space=sflag, size = 0x4, scoped, tag = 'scoped memory for tpu_custom_call.1']
    #allocation7 [shape = 'u8[65536]{0}', space=vmem, size = 0x10000, scoped, tag = 'input window, operand 3, single buffered']
    #allocation8 [shape = 'u8[4096]{0}', space=vmem, size = 0x1000, scoped, tag = 'output window, operand 0, single buffered']
    %10 = vsyncpa [#allocation3], 0
    %11 = vsyncpa [#allocation6], 0
    %12 = vsyncpa [#allocation4], 0
    // Predicated region
    $region2: #{tpu_custom_call.1} parent=1 // pred_check
      _
    $region3: #{tpu_custom_call.1} parent=1 // pred_check_branch
      %14 = sbr.rel (0) target = $region5
    $region4: #{tpu_custom_call.1} parent=1 // pred_region
      %16 = vsyncadd [#allocation3], 0
      %s18 = sshll.u32 %s0, 4
      %s19 = int_to_ptr.hbm [resolvable:$true] %s18
      %s20 = sshll.u32 [#allocation2], 4
      %s21 = int_to_ptr.vmem [resolvable:$true] %s20
      %23 = dma.hbm_to_vmem [thread:$0]  %s19, 128, %s21, [#allocation3]
    $region5: #{tpu_custom_call.1} parent=1 // pred_fallthru
      _
    // Predicated region
    $region6: #{tpu_custom_call.1} parent=1 // pred_check
      _
    $region7: #{tpu_custom_call.1} parent=1 // pred_check_branch
      %25 = sbr.rel (0) target = $region9
    $region8: #{tpu_custom_call.1} parent=1 // pred_region
      %27 = vsyncadd [#allocation6], 0
      %s28 = sshll.u32 %s1, 4
      %s29 = int_to_ptr.hbm [resolvable:$true] %s28
      %s30 = sshll.u32 [#allocation5], 4
      %s31 = int_to_ptr.vmem [resolvable:$true] %s30
      %36 = dma.hbm_to_vmem [thread:$0]  %s29, 256, %s31, [#allocation6], 128, 128, 8
    $region9: #{tpu_custom_call.1} parent=1 // pred_fallthru
      _
    // Predicated region
    $region10: #{tpu_custom_call.1} parent=1 // pred_check
      _
    $region11: #{tpu_custom_call.1} parent=1 // pred_check_branch
      %38 = sbr.rel (0) target = $region13
    $region12: #{tpu_custom_call.1} parent=1 // pred_region
      _
    $region13: #{tpu_custom_call.1} parent=1 // pred_fallthru
      _
    // Predicated region
    $region14: #{tpu_custom_call.1} parent=1 // pred_check
      _
    $region15: #{tpu_custom_call.1} parent=1 // pred_check_branch
      %40 = sbr.rel (0) target = $region17
    $region16: #{tpu_custom_call.1} parent=1 // pred_region
      %42 = vsyncadd [#allocation6], 0
      %s43 = sshll.u32 %s3, 4
      %s44 = int_to_ptr.hbm [resolvable:$true] %s43
      %s45 = sshll.u32 [#allocation7], 4
      %s46 = int_to_ptr.vmem [resolvable:$true] %s45
      %51 = dma.hbm_to_vmem [thread:$0]  %s44, 2048, %s46, [#allocation6], 128, 128, 8
    $region17: #{tpu_custom_call.1} parent=1 // pred_fallthru
      _
    // Predicated region
    $region18: #{tpu_custom_call.1} parent=1 // pred_check
      _
    $region19: #{tpu_custom_call.1} parent=1 // pred_check_branch
      %53 = sbr.rel (0) target = $region21
    $region20: #{tpu_custom_call.1} parent=1 // pred_region
      _
    $region21: #{tpu_custom_call.1} parent=1 // pred_fallthru
      _
    // Predicated region
    $region22: #{tpu_custom_call.1} parent=1 // pred_check
      _
    $region23: #{tpu_custom_call.1} parent=1 // pred_check_branch
      %55 = sbr.rel (0) target = $region25
    $region24: #{tpu_custom_call.1} parent=1 // pred_region
      %57 = dma.done [#allocation3], 128
    $region25: #{tpu_custom_call.1} parent=1 // pred_fallthru
      _
    // Predicated region
    $region26: #{tpu_custom_call.1} parent=1 // pred_check
      _
    $region27: #{tpu_custom_call.1} parent=1 // pred_check_branch
      %59 = sbr.rel (0) target = $region29
    $region28: #{tpu_custom_call.1} parent=1 // pred_region
      %61 = dma.done [#allocation6], 256
    $region29: #{tpu_custom_call.1} parent=1 // pred_fallthru
      _
    // Predicated region
    $region30: #{tpu_custom_call.1} parent=1 // pred_check
      _
    $region31: #{tpu_custom_call.1} parent=1 // pred_check_branch
      %63 = sbr.rel (0) target = $region33
    $region32: #{tpu_custom_call.1} parent=1 // pred_region
      %65 = dma.done [#allocation6], 2048
    $region33: #{tpu_custom_call.1} parent=1 // pred_fallthru
      _
    %v66 = vld [vmem:[#allocation2] sm:$0xff]
    %v67 = vld [vmem:[#allocation5] sm:$0xff]
    %v68 = vld [vmem:[#allocation5 + $0x8] sm:$0xff]
    %v69 = vld [vmem:[%s2] sm:$0x1]
    %v71 = vperm.slane %v69, 0
    %vm73 = vcmask 130048
    %v75 = vsel %vm73, %v66, 0
    %77 = vmatpush.msra.mxu0 0.0
    %78 = vmatpush.msra.mxu0 0.0
    %79 = vmatpush.msra.mxu0 0.0
    %80 = vmatpush.msra.mxu0 0.0
    %81 = vmatpush.msra.mxu0 0.0
    %82 = vmatpush.msra.mxu0 0.0
    %83 = vmatpush.msra.mxu0 0.0
    %84 = vmatpush.msra.mxu0 0.0
    %85 = vmatpush.msra.mxu0 0.0
    %86 = vmatpush.msra.mxu0 0.0
    %87 = vmatpush.msra.mxu0 0.0
    %88 = vmatpush.msra.mxu0 0.0
    %89 = vmatpush.msra.mxu0 0.0
    %90 = vmatpush.msra.mxu0 0.0
    %91 = vmatpush.msra.mxu0 %v68
    %92 = vmatpush.msra.mxu0 %v67
    %93 = vmatmul.f32.gmra.mxu0 %v75
    %v94 = vpop.f32.mrf.mxu0
    %v95 = vadd.f32 %v71, %v94
    %96 = vdwg.mxu0
    %v97 = vmax.f32 %v95, 0.0
    %v98 = vld [vmem:[#allocation7] sm:$0xff]
    %v99 = vld [vmem:[#allocation7 + $0x8] sm:$0xff]
    %v100 = vld [vmem:[#allocation7 + $0x10] sm:$0xff]
    %v101 = vld [vmem:[#allocation7 + $0x18] sm:$0xff]
    %v102 = vld [vmem:[#allocation7 + $0x20] sm:$0xff]
    %v103 = vld [vmem:[#allocation7 + $0x28] sm:$0xff]
    %v104 = vld [vmem:[#allocation7 + $0x30] sm:$0xff]
    %v105 = vld [vmem:[#allocation7 + $0x38] sm:$0xff]
    %v106 = vld [vmem:[#allocation7 + $0x40] sm:$0xff]
    %v107 = vld [vmem:[#allocation7 + $0x48] sm:$0xff]
    %v108 = vld [vmem:[#allocation7 + $0x50] sm:$0xff]
    %v109 = vld [vmem:[#allocation7 + $0x58] sm:$0xff]
    %v110 = vld [vmem:[#allocation7 + $0x60] sm:$0xff]
    %v111 = vld [vmem:[#allocation7 + $0x68] sm:$0xff]
    %v112 = vld [vmem:[#allocation7 + $0x70] sm:$0xff]
    %v113 = vld [vmem:[#allocation7 + $0x78] sm:$0xff]
    %v114 = vld [vmem:[%s4] sm:$0x1]
    %v116 = vperm.slane %v114, 0
    %118 = vmatpush.msra.mxu0 %v113
    %119 = vmatpush.msra.mxu0 %v112
    %120 = vmatpush.msra.mxu0 %v111
    %121 = vmatpush.msra.mxu0 %v110
    %122 = vmatpush.msra.mxu0 %v109
    %123 = vmatpush.msra.mxu0 %v108
    %124 = vmatpush.msra.mxu0 %v107
    %125 = vmatpush.msra.mxu0 %v106
    %126 = vmatpush.msra.mxu0 %v105
    %127 = vmatpush.msra.mxu0 %v104
    %128 = vmatpush.msra.mxu0 %v103
    %129 = vmatpush.msra.mxu0 %v102
    %130 = vmatpush.msra.mxu0 %v101
    %131 = vmatpush.msra.mxu0 %v100
    %132 = vmatpush.msra.mxu0 %v99
    %133 = vmatpush.msra.mxu0 %v98
    %134 = vmatmul.f32.gmra.mxu0 %v97
    %v135 = vpop.f32.mrf.mxu0
    %v136 = vadd.f32 %v116, %v135
    %137 = vdwg.mxu0
    %138 = vst [vmem:[#allocation8] sm:$0xff] %v136
    // Predicated region
    $region34: #{tpu_custom_call.1} parent=1 // pred_check
      _
    $region35: #{tpu_custom_call.1} parent=1 // pred_check_branch
      %140 = sbr.rel (0) target = $region37
    $region36: #{tpu_custom_call.1} parent=1 // pred_region
      %142 = vsyncadd [#allocation4], 0
      %s144 = sshll.u32 [#allocation8], 4
      %s145 = int_to_ptr.vmem [resolvable:$true] %s144
      %s146 = sshll.u32 %s5, 4
      %s147 = int_to_ptr.hbm [resolvable:$true] %s146
      %149 = dma.vmem_to_hbm [thread:$0]  %s145, 128, %s147, [#allocation4]
    $region37: #{tpu_custom_call.1} parent=1 // pred_fallthru
      _
    // Predicated region
    $region38: #{tpu_custom_call.1} parent=1 // pred_check
      _
    $region39: #{tpu_custom_call.1} parent=1 // pred_check_branch
      %151 = sbr.rel (0) target = $region41
    $region40: #{tpu_custom_call.1} parent=1 // pred_region
      %153 = dma.done [#allocation4], 128
    $region41: #{tpu_custom_call.1} parent=1 // pred_fallthru
      _
    %154 = vsyncpa [#allocation3], 1
    %155 = vsyncpa [#allocation6], 1
    %156 = vsyncpa [#allocation4], 1

</llo_original>
